<compile_context>
chip_gen: v5e
topology: v5e:2x2
jax: 0.10.0
libtpu: 0.0.40
codegen_flags: <defaults>
</compile_context>

<pallas_src>
import functools

import jax
import jax.numpy as jnp
from jax import lax
from jax.experimental import pallas as pl
from jax.experimental.pallas import tpu as pltpu


def _round_up(x, m):
    return ((x + m - 1) // m) * m


def prepare_lm_head(w_head, *, vocab_tile=2048):
    """Cast the LM head to bf16 and pad vocab to a tile multiple ONCE.

    Returns (w_padded_bf16, V_actual, vocab_tile_used).  Do this at model init
    and pass the tuple to dpo_loss: it avoids a full HBM read+write of the
    (potentially ~77 MB) LM head on every loss call.
    """
    _, V = w_head.shape
    v128 = _round_up(V, 128)
    tv = v128 if v128 <= vocab_tile else vocab_tile
    v_pad = _round_up(V, tv)
    w = jnp.pad(w_head.astype(jnp.bfloat16), ((0, 0), (0, v_pad - V)))
    return w, V, tv


def _lse_gather_kernel(x_ref, w_ref, ids_ref, out_ref,
                       m_sc, l_sc, t_sc, *, v_actual, tv, mask_pad):
    """One (vocab-tile, row-tile) step of target-log-prob computation.

    Grid = (vocab tiles OUTER, row tiles INNER): the W tile is stationary
    across the inner sweep, so it is streamed from HBM only once per call.

    x_ref   : [TR, H]   bf16 hidden states (rows = flattened chosen+rejected tokens)
    w_ref   : [H, TV]   bf16 LM-head tile
    ids_ref : [TR, 1]   int32 next-token ids
    out_ref : [TR, 1]   f32 per-row target log-prob (valid after last vocab tile)
    m_sc/l_sc/t_sc : [n_row_tiles, TR, 1] f32 persistent per-row state
                     (running max / running sum-exp / gathered target logit)
    """
    j = pl.program_id(0)   # vocab tile (outer, reduction carried in scratch)
    i = pl.program_id(1)   # row tile   (inner)

    @pl.when(j == 0)
    def _():
        m_sc[i] = jnp.full(m_sc.shape[1:], -jnp.inf, dtype=jnp.float32)
        l_sc[i] = jnp.zeros(l_sc.shape[1:], dtype=jnp.float32)
        t_sc[i] = jnp.zeros(t_sc.shape[1:], dtype=jnp.float32)

    # MXU: bf16 x bf16 -> f32 accumulate.
    logits = jnp.dot(x_ref[...], w_ref[...],
                     preferred_element_type=jnp.float32)          # [TR, TV]

    # Global vocab column index of each lane.
    col = j * tv + lax.broadcasted_iota(jnp.int32, logits.shape, 1)
    if mask_pad:
        # Mask padded vocab columns to -inf so they never contribute to the
        # logsumexp (only needed when V is not a multiple of the tile width).
        logits = jnp.where(col < v_actual, logits, -jnp.inf)

    # Online (flash-style) logsumexp across vocab tiles.
    m_prev = m_sc[i]
    m_new = jnp.maximum(m_prev, jnp.max(logits, axis=-1, keepdims=True))
    alpha = jnp.exp(m_prev - m_new)
    p_sum = jnp.sum(jnp.exp(logits - m_new), axis=-1, keepdims=True)
    l_sc[i] = alpha * l_sc[i] + p_sum
    m_sc[i] = m_new

    # Gather the target logit: exactly one column (across all vocab tiles)
    # matches each row's id; padded columns can never match (ids < V), so the
    # masked tile is safe to reuse here (keeps a single live [TR,TV] f32).
    tgt_mask = col == ids_ref[...]
    t_sc[i] = t_sc[i] + jnp.sum(jnp.where(tgt_mask, logits, 0.0),
                                axis=-1, keepdims=True)

    @pl.when(j == pl.num_programs(0) - 1)
    def _():
        out_ref[...] = t_sc[i] - (m_sc[i] + jnp.log(l_sc[i]))


def dpo_loss(chosen_hidden, rejected_hidden, lm_head, chosen_ids, rejected_ids,
             beta=0.1, *, row_tile=256, vocab_tile=2048):
    """DPO loss.

    lm_head: either the raw [H, V] weight, or (preferably) the tuple returned
    by prepare_lm_head(w_head) so the bf16 cast + pad happen once at init.
    Chosen/rejected branches are fused into one [R, H] @ [H, V] sweep with the
    LM head as the stationary operand.
    """
    if isinstance(lm_head, tuple):
        w, V, tv = lm_head
    else:
        w, V, tv = prepare_lm_head(lm_head, vocab_tile=vocab_tile)

    B, T, H = chosen_hidden.shape
    Tm = T - 1
    R = 2 * B * Tm
    v_pad = w.shape[1]

    # Flatten next-token-prediction rows of both branches into one 2D problem.
    xc = chosen_hidden[:, :-1, :].reshape(B * Tm, H)
    xr = rejected_hidden[:, :-1, :].reshape(B * Tm, H)
    x = jnp.concatenate([xc, xr], axis=0).astype(jnp.bfloat16)        # [R, H]
    ids = jnp.concatenate(
        [chosen_ids[:, 1:].reshape(-1), rejected_ids[:, 1:].reshape(-1)],
        axis=0).astype(jnp.int32)                                     # [R]

    # Row padding (sublane friendly).
    tr = row_tile if R >= row_tile else _round_up(R, 8)
    r_pad = _round_up(R, tr)
    n_rt = r_pad // tr
    n_vt = v_pad // tv

    x = jnp.pad(x, ((0, r_pad - R), (0, 0)))
    ids2d = jnp.pad(ids, (0, r_pad - R)).reshape(r_pad, 1)

    kernel = functools.partial(_lse_gather_kernel, v_actual=V, tv=tv,
                               mask_pad=(v_pad != V))

    lp_rows = pl.pallas_call(
        kernel,
        out_shape=jax.ShapeDtypeStruct((r_pad, 1), jnp.float32),
        grid_spec=pltpu.PrefetchScalarGridSpec(
            num_scalar_prefetch=0,
            # Vocab OUTER, rows INNER: the W tile's block index only changes
            # with the outer axis, so W is streamed from HBM once per call
            # (the much smaller x / ids are re-streamed per vocab tile).
            grid=(n_vt, n_rt),
            in_specs=[
                pl.BlockSpec((tr, H), lambda j, i: (i, 0)),   # hidden rows
                pl.BlockSpec((H, tv), lambda j, i: (0, j)),   # LM-head tile (stationary)
                pl.BlockSpec((tr, 1), lambda j, i: (i, 0)),   # target ids
            ],
            out_specs=pl.BlockSpec((tr, 1), lambda j, i: (i, 0)),
            # Persistent per-row-tile online-logsumexp state. NOTE: (tr, 1)
            # f32 slices pad to a full 128-lane tile in VMEM (~512 B per row);
            # fine for typical DPO batch sizes.
            scratch_shapes=[pltpu.VMEM((n_rt, tr, 1), jnp.float32)] * 3,
        ),
        compiler_params=pltpu.CompilerParams(
            dimension_semantics=("arbitrary", "arbitrary"),
            # W double-buffer + ~3 live [tr, tv] f32 intermediates + state
            # scratch fit well under 48 MiB at (256, 2048); also respects
            # v7x's 64 MiB physical VMEM. v6e can take tr=512 / tv=4096.
            vmem_limit_bytes=48 * 1024 * 1024,
        ),
    )(x, w, ids2d)

    # Tiny epilogue in plain JAX: per-sequence sums, beta margin, -logsigmoid.
    lp = lp_rows[:R, 0].reshape(2, B, Tm).sum(axis=-1)     # [2, B]
    z = beta * (lp[0] - lp[1])
    return -jnp.mean(jax.nn.log_sigmoid(z))


def _reference_dpo_loss(chosen_hidden, rejected_hidden, w_head, chosen_ids,
                        rejected_ids, beta=0.1):
    """Pure-JAX f32 reference mirroring the PyTorch module."""
    def get_log_probs(hidden, ids):
        logits = jnp.einsum("bth,hv->btv", hidden[:, :-1, :], w_head)
        log_probs = jax.nn.log_softmax(logits, axis=-1)
        tgt = jnp.take_along_axis(log_probs, ids[:, 1:, None], axis=-1)[..., 0]
        return jnp.sum(tgt, axis=-1)

    lp_c = get_log_probs(chosen_hidden, chosen_ids)
    lp_r = get_log_probs(rejected_hidden, rejected_ids)
    return -jnp.mean(jax.nn.log_sigmoid(beta * (lp_c - lp_r)))


if __name__ == "__main__":
    # Small synthetic shapes: batch=2, seq=8, hidden=32, vocab=128.
    B, T, H, V = 2, 8, 32, 128
    beta = 0.1

    key = jax.random.PRNGKey(0)
    k_emb, k_head, k_cid, k_rid = jax.random.split(key, 4)

    # Deterministic "model" parameters.
    embedding = jax.random.normal(k_emb, (V, H), dtype=jnp.float32) * 0.02
    w_head = jax.random.normal(k_head, (H, V), dtype=jnp.float32) * 0.02

    # Hoisted out of the loss: cast + pad the LM head once at init.
    lm_head = prepare_lm_head(w_head)

    # Deterministic tokenized sequences (stand-in for tokenizer(prompt, ...)).
    chosen_ids = jax.random.randint(k_cid, (B, T), 0, V, dtype=jnp.int32)
    rejected_ids = jax.random.randint(k_rid, (B, T), 0, V, dtype=jnp.int32)

    # Stand-in model hidden states (embedding lookup is glue).
    chosen_hidden = embedding[chosen_ids]      # [B, T, H]
    rejected_hidden = embedding[rejected_ids]  # [B, T, H]

    loss = dpo_loss(chosen_hidden, rejected_hidden, lm_head,
                    chosen_ids, rejected_ids, beta=beta)
    loss = jax.block_until_ready(loss)

    ref = _reference_dpo_loss(chosen_hidden, rejected_hidden, w_head,
                              chosen_ids, rejected_ids, beta=beta)
    # bf16 inputs with f32 accumulation -> slightly looser tolerance vs f32 ref.
    assert jnp.allclose(loss, ref, rtol=1e-3, atol=1e-3), (loss, ref)

    print("KERNEL_OK")
</pallas_src>

<mosaic_0001>
module attributes {stable_mosaic.version = 11 : i64} {
  func.func @_lse_gather_kernel(%arg0: i32, %arg1: i32, %arg2: memref<32x32xbf16, #tpu.memory_space<vmem>>, %arg3: memref<32x128xbf16, #tpu.memory_space<vmem>>, %arg4: memref<32x1xi32, #tpu.memory_space<vmem>>, %arg5: memref<32x1xf32, #tpu.memory_space<vmem>>, %arg6: memref<1x32x1xf32, #tpu.memory_space<vmem>>, %arg7: memref<1x32x1xf32, #tpu.memory_space<vmem>>, %arg8: memref<1x32x1xf32, #tpu.memory_space<vmem>>) attributes {dimension_semantics = [#tpu.dimension_semantics<arbitrary>, #tpu.dimension_semantics<arbitrary>], iteration_bounds = array<i64: 1, 1>, scalar_prefetch = 0 : i64, scratch_operands = 3 : i64, tpu.core_type = #tpu.core_type<tc>, window_params = [{transform_indices = @transform_0, window_bounds = array<i64: 32, 32>}, {transform_indices = @transform_1, window_bounds = array<i64: 32, 128>}, {transform_indices = @transform_2, window_bounds = array<i64: 32, 1>}, {transform_indices = @transform_3, window_bounds = array<i64: 32, 1>}]} {
    %c0_i32 = arith.constant 0 : i32
    %0 = arith.cmpi eq, %arg0, %c0_i32 : i32
    %1 = arith.extui %0 : i1 to i32
    %c0_i32_0 = arith.constant 0 : i32
    %2 = arith.cmpi ne, %1, %c0_i32_0 : i32
    scf.if %2 {
      %cst_24 = arith.constant 0xFF800000 : f32
      %54 = vector.broadcast %cst_24 : f32 to vector<32x1xf32>
      %55 = arith.index_cast %arg1 : i32 to index
      %c0_25 = arith.constant 0 : index
      %c0_26 = arith.constant 0 : index
      %56 = vector.load %arg6[%55, %c0_25, %c0_26] : memref<1x32x1xf32, #tpu.memory_space<vmem>>, vector<1x32x1xf32>
      %57 = vector.shape_cast %56 : vector<1x32x1xf32> to vector<32x1xf32>
      %58 = vector.shape_cast %54 : vector<32x1xf32> to vector<1x32x1xf32>
      tpu.vector_store %arg6[%55, %c0_25, %c0_26], %58 {strides = array<i32>} : memref<1x32x1xf32, #tpu.memory_space<vmem>>, vector<1x32x1xf32>,
      %cst_27 = arith.constant 0.000000e+00 : f32
      %59 = vector.broadcast %cst_27 : f32 to vector<32x1xf32>
      %60 = arith.index_cast %arg1 : i32 to index
      %c0_28 = arith.constant 0 : index
      %c0_29 = arith.constant 0 : index
      %61 = vector.load %arg7[%60, %c0_28, %c0_29] : memref<1x32x1xf32, #tpu.memory_space<vmem>>, vector<1x32x1xf32>
      %62 = vector.shape_cast %61 : vector<1x32x1xf32> to vector<32x1xf32>
      %63 = vector.shape_cast %59 : vector<32x1xf32> to vector<1x32x1xf32>
      tpu.vector_store %arg7[%60, %c0_28, %c0_29], %63 {strides = array<i32>} : memref<1x32x1xf32, #tpu.memory_space<vmem>>, vector<1x32x1xf32>,
      %cst_30 = arith.constant 0.000000e+00 : f32
      %64 = vector.broadcast %cst_30 : f32 to vector<32x1xf32>
      %65 = arith.index_cast %arg1 : i32 to index
      %c0_31 = arith.constant 0 : index
      %c0_32 = arith.constant 0 : index
      %66 = vector.load %arg8[%65, %c0_31, %c0_32] : memref<1x32x1xf32, #tpu.memory_space<vmem>>, vector<1x32x1xf32>
      %67 = vector.shape_cast %66 : vector<1x32x1xf32> to vector<32x1xf32>
      %68 = vector.shape_cast %64 : vector<32x1xf32> to vector<1x32x1xf32>
      tpu.vector_store %arg8[%65, %c0_31, %c0_32], %68 {strides = array<i32>} : memref<1x32x1xf32, #tpu.memory_space<vmem>>, vector<1x32x1xf32>,
    } else {
    }
    %c0 = arith.constant 0 : index
    %c0_1 = arith.constant 0 : index
    %3 = vector.load %arg2[%c0, %c0_1] : memref<32x32xbf16, #tpu.memory_space<vmem>>, vector<32x32xbf16>
    %c0_2 = arith.constant 0 : index
    %c0_3 = arith.constant 0 : index
    %4 = vector.load %arg3[%c0_2, %c0_3] : memref<32x128xbf16, #tpu.memory_space<vmem>>, vector<32x128xbf16>
    %cst = arith.constant dense<0.000000e+00> : vector<32x128xf32>
    %5 = tpu.matmul %3, %4, %cst {dimension_numbers = #tpu.dot_dimension_numbers<[1], [0], [0], [1], [0, 0, 1, 1], [], []>} : vector<32x32xbf16>, vector<32x128xbf16>, vector<32x128xf32> -> vector<32x128xf32>
    %c128_i32 = arith.constant 128 : i32
    %6 = arith.muli %arg0, %c128_i32 : i32
    %7 = tpu.iota {dimensions = array<i32: 1>} : vector<32x128xi32>
    %8 = vector.broadcast %6 : i32 to vector<32x128xi32>
    %9 = arith.addi %8, %7 : vector<32x128xi32>
    %10 = arith.index_cast %arg1 : i32 to index
    %c0_4 = arith.constant 0 : index
    %c0_5 = arith.constant 0 : index
    %11 = vector.load %arg6[%10, %c0_4, %c0_5] : memref<1x32x1xf32, #tpu.memory_space<vmem>>, vector<1x32x1xf32>
    %12 = vector.shape_cast %11 : vector<1x32x1xf32> to vector<32x1xf32>
    %cst_6 = arith.constant dense<0xFF800000> : vector<32xf32>
    %13 = vector.multi_reduction <maximumf>, %5, %cst_6 [1] : vector<32x128xf32> to vector<32xf32>
    %14 = vector.shape_cast %13 : vector<32xf32> to vector<32x1xf32>
    %15 = arith.maximumf %12, %14 : vector<32x1xf32>
    %16 = arith.subf %12, %15 : vector<32x1xf32>
    %17 = math.exp %16 : vector<32x1xf32>
    %18 = vector.broadcast %15 : vector<32x1xf32> to vector<32x128xf32>
    %19 = arith.subf %5, %18 : vector<32x128xf32>
    %20 = math.exp %19 : vector<32x128xf32>
    %cst_7 = arith.constant dense<0.000000e+00> : vector<32xf32>
    %21 = vector.multi_reduction <add>, %20, %cst_7 [1] : vector<32x128xf32> to vector<32xf32>
    %22 = vector.shape_cast %21 : vector<32xf32> to vector<32x1xf32>
    %23 = arith.index_cast %arg1 : i32 to index
    %c0_8 = arith.constant 0 : index
    %c0_9 = arith.constant 0 : index
    %24 = vector.load %arg7[%23, %c0_8, %c0_9] : memref<1x32x1xf32, #tpu.memory_space<vmem>>, vector<1x32x1xf32>
    %25 = vector.shape_cast %24 : vector<1x32x1xf32> to vector<32x1xf32>
    %26 = arith.mulf %17, %25 : vector<32x1xf32>
    %27 = arith.addf %26, %22 : vector<32x1xf32>
    %28 = arith.index_cast %arg1 : i32 to index
    %c0_10 = arith.constant 0 : index
    %c0_11 = arith.constant 0 : index
    %29 = vector.load %arg7[%28, %c0_10, %c0_11] : memref<1x32x1xf32, #tpu.memory_space<vmem>>, vector<1x32x1xf32>
    %30 = vector.shape_cast %29 : vector<1x32x1xf32> to vector<32x1xf32>
    %31 = vector.shape_cast %27 : vector<32x1xf32> to vector<1x32x1xf32>
    tpu.vector_store %arg7[%28, %c0_10, %c0_11], %31 {strides = array<i32>} : memref<1x32x1xf32, #tpu.memory_space<vmem>>, vector<1x32x1xf32>,
    %32 = arith.index_cast %arg1 : i32 to index
    %c0_12 = arith.constant 0 : index
    %c0_13 = arith.constant 0 : index
    %33 = vector.load %arg6[%32, %c0_12, %c0_13] : memref<1x32x1xf32, #tpu.memory_space<vmem>>, vector<1x32x1xf32>
    %34 = vector.shape_cast %33 : vector<1x32x1xf32> to vector<32x1xf32>
    %35 = vector.shape_cast %15 : vector<32x1xf32> to vector<1x32x1xf32>
    tpu.vector_store %arg6[%32, %c0_12, %c0_13], %35 {strides = array<i32>} : memref<1x32x1xf32, #tpu.memory_space<vmem>>, vector<1x32x1xf32>,
    %c0_14 = arith.constant 0 : index
    %c0_15 = arith.constant 0 : index
    %36 = vector.load %arg4[%c0_14, %c0_15] : memref<32x1xi32, #tpu.memory_space<vmem>>, vector<32x1xi32>
    %37 = vector.broadcast %36 : vector<32x1xi32> to vector<32x128xi32>
    %38 = arith.cmpi eq, %9, %37 : vector<32x128xi32>
    %39 = arith.index_cast %arg1 : i32 to index
    %c0_16 = arith.constant 0 : index
    %c0_17 = arith.constant 0 : index
    %40 = vector.load %arg8[%39, %c0_16, %c0_17] : memref<1x32x1xf32, #tpu.memory_space<vmem>>, vector<1x32x1xf32>
    %41 = vector.shape_cast %40 : vector<1x32x1xf32> to vector<32x1xf32>
    %cst_18 = arith.constant 0.000000e+00 : f32
    %42 = vector.broadcast %cst_18 : f32 to vector<32x128xf32>
    %43 = arith.select %38, %5, %42 : vector<32x128xi1>, vector<32x128xf32>
    %cst_19 = arith.constant dense<0.000000e+00> : vector<32xf32>
    %44 = vector.multi_reduction <add>, %43, %cst_19 [1] : vector<32x128xf32> to vector<32xf32>
    %45 = vector.shape_cast %44 : vector<32xf32> to vector<32x1xf32>
    %46 = arith.addf %41, %45 : vector<32x1xf32>
    %47 = arith.index_cast %arg1 : i32 to index
    %c0_20 = arith.constant 0 : index
    %c0_21 = arith.constant 0 : index
    %48 = vector.load %arg8[%47, %c0_20, %c0_21] : memref<1x32x1xf32, #tpu.memory_space<vmem>>, vector<1x32x1xf32>
    %49 = vector.shape_cast %48 : vector<1x32x1xf32> to vector<32x1xf32>
    %50 = vector.shape_cast %46 : vector<32x1xf32> to vector<1x32x1xf32>
    tpu.vector_store %arg8[%47, %c0_20, %c0_21], %50 {strides = array<i32>} : memref<1x32x1xf32, #tpu.memory_space<vmem>>, vector<1x32x1xf32>,
    %c0_i32_22 = arith.constant 0 : i32
    %51 = arith.cmpi eq, %arg0, %c0_i32_22 : i32
    %52 = arith.extui %51 : i1 to i32
    %c0_i32_23 = arith.constant 0 : i32
    %53 = arith.cmpi ne, %52, %c0_i32_23 : i32
    scf.if %53 {
      %54 = arith.index_cast %arg1 : i32 to index
      %c0_24 = arith.constant 0 : index
      %c0_25 = arith.constant 0 : index
      %55 = vector.load %arg8[%54, %c0_24, %c0_25] : memref<1x32x1xf32, #tpu.memory_space<vmem>>, vector<1x32x1xf32>
      %56 = vector.shape_cast %55 : vector<1x32x1xf32> to vector<32x1xf32>
      %57 = arith.index_cast %arg1 : i32 to index
      %c0_26 = arith.constant 0 : index
      %c0_27 = arith.constant 0 : index
      %58 = vector.load %arg6[%57, %c0_26, %c0_27] : memref<1x32x1xf32, #tpu.memory_space<vmem>>, vector<1x32x1xf32>
      %59 = vector.shape_cast %58 : vector<1x32x1xf32> to vector<32x1xf32>
      %60 = arith.index_cast %arg1 : i32 to index
      %c0_28 = arith.constant 0 : index
      %c0_29 = arith.constant 0 : index
      %61 = vector.load %arg7[%60, %c0_28, %c0_29] : memref<1x32x1xf32, #tpu.memory_space<vmem>>, vector<1x32x1xf32>
      %62 = vector.shape_cast %61 : vector<1x32x1xf32> to vector<32x1xf32>
      %63 = math.log %62 : vector<32x1xf32>
      %64 = arith.addf %59, %63 : vector<32x1xf32>
      %65 = arith.subf %56, %64 : vector<32x1xf32>
      %c0_30 = arith.constant 0 : index
      %c0_31 = arith.constant 0 : index
      %66 = vector.load %arg5[%c0_30, %c0_31] : memref<32x1xf32, #tpu.memory_space<vmem>>, vector<32x1xf32>
      tpu.vector_store %arg5[%c0_30, %c0_31], %65 {strides = array<i32>} : memref<32x1xf32, #tpu.memory_space<vmem>>, vector<32x1xf32>,
    } else {
    }
    return
  }
  func.func @transform_0(%arg0: i32, %arg1: i32) -> (i32, i32) {
    %c0_i32 = arith.constant 0 : i32
    %c0_i32_0 = arith.constant 0 : i32
    return %arg1, %c0_i32 : i32, i32
  }
  func.func @transform_1(%arg0: i32, %arg1: i32) -> (i32, i32) {
    %c0_i32 = arith.constant 0 : i32
    %c0_i32_0 = arith.constant 0 : i32
    return %c0_i32, %arg0 : i32, i32
  }
  func.func @transform_2(%arg0: i32, %arg1: i32) -> (i32, i32) {
    %c0_i32 = arith.constant 0 : i32
    %c0_i32_0 = arith.constant 0 : i32
    return %arg1, %c0_i32 : i32, i32
  }
  func.func @transform_3(%arg0: i32, %arg1: i32) -> (i32, i32) {
    %c0_i32 = arith.constant 0 : i32
    %c0_i32_0 = arith.constant 0 : i32
    return %arg1, %c0_i32 : i32, i32
  }
}

</mosaic_0001>

<llo_original>
// kernel: tpu_custom_call.1
$region0: #{tpu_custom_call.1}
  #allocation0 [shape = 'u32[]', space=smem, size = 0x4, offset = 0x4, fixed_abs, tag = 'smem constant byte address 0x4 - core index']
  #allocation1 [shape = 'u32[72,128]{1,0:T(1,128)}', space=vmem, size = 0x9000, scoped, tag = 'internal scratch']
  #allocation2 [shape = 'f32[1,32,1]{2,1,0:T(8,128)}', space=vmem, size = 0x4000, scoped, tag = 'scratch operand']
  #allocation3 [shape = 'f32[1,32,1]{2,1,0:T(8,128)}', space=vmem, size = 0x4000, scoped, tag = 'scratch operand']
  #allocation4 [shape = 'f32[1,32,1]{2,1,0:T(8,128)}', space=vmem, size = 0x4000, scoped, tag = 'scratch operand']
  %s0 = inlined_call_operand.vmem [shape: bf16[32,32], index: 0, kind: input, shape index: {}]
  %s1 = inlined_call_operand.vmem [shape: bf16[32,128], index: 1, kind: input, shape index: {}]
  %s2 = inlined_call_operand.vmem [shape: s32[32,1], index: 2, kind: input, shape index: {}]
  %s3 = inlined_call_operand.vmem [shape: f32[32,1], index: 3, kind: output, shape index: {}]
  %s4 = sld [smem:[#allocation0]]
  $region30: #{tpu_custom_call.1} parent=0
    _
  %s6 = ssub.s32 1, %s4
  %s7 = scalar_select 0, %s6, %s4
  // Predicated region
  $region2: #{tpu_custom_call.1} parent=0 // pred_check
    _
  $region3: #{tpu_custom_call.1} parent=0 // pred_check_branch
    %9 = sbr.rel (0) target = $region5
  $region4: #{tpu_custom_call.1} parent=0 // pred_region
    _
  $region5: #{tpu_custom_call.1} parent=0 // pred_fallthru
    _
  // Predicated region
  $region6: #{tpu_custom_call.1} parent=0 // pred_check
    _
  $region7: #{tpu_custom_call.1} parent=0 // pred_check_branch
    %11 = sbr.rel (0) target = $region9
  $region8: #{tpu_custom_call.1} parent=0 // pred_region
    _
  $region9: #{tpu_custom_call.1} parent=0 // pred_fallthru
    _
  // Predicated region
  $region10: #{tpu_custom_call.1} parent=0 // pred_check
    _
  $region11: #{tpu_custom_call.1} parent=0 // pred_check_branch
    %13 = sbr.rel (0) target = $region13
  $region12: #{tpu_custom_call.1} parent=0 // pred_region
    _
  $region13: #{tpu_custom_call.1} parent=0 // pred_fallthru
    _
  %p15 = scmp.eq.s32.totalorder 0, 0
  // Predicated region
  $region14: #{tpu_custom_call.1} parent=0 // pred_check
    %p16 = pneg %p15
  $region15: #{tpu_custom_call.1} parent=0 // pred_check_branch
    %18 = sbr.rel (%p16) target = $region17
  $region16: #{tpu_custom_call.1} parent=0 // pred_region
    %s19 = smul.u32 0, 32
    %s20 = scalar_lea.vmem [#allocation2], %s19
    %vm21 = vcmask 7168
    %22 = vst.msk [vmem:[%s20] sm:$0xff] %vm21, -inf
    %23 = vst.msk [vmem:[%s20 + $0x8] sm:$0xff] %vm21, -inf
    %24 = vst.msk [vmem:[%s20 + $0x10] sm:$0xff] %vm21, -inf
    %25 = vst.msk [vmem:[%s20 + $0x18] sm:$0xff] %vm21, -inf
    %s26 = scalar_lea.vmem [#allocation3], %s19
    %27 = vst.msk [vmem:[%s26] sm:$0xff] %vm21, 0.0
    %28 = vst.msk [vmem:[%s26 + $0x8] sm:$0xff] %vm21, 0.0
    %29 = vst.msk [vmem:[%s26 + $0x10] sm:$0xff] %vm21, 0.0
    %30 = vst.msk [vmem:[%s26 + $0x18] sm:$0xff] %vm21, 0.0
    %s31 = scalar_lea.vmem [#allocation4], %s19
    %32 = vst.msk [vmem:[%s31] sm:$0xff] %vm21, 0.0
    %33 = vst.msk [vmem:[%s31 + $0x8] sm:$0xff] %vm21, 0.0
    %34 = vst.msk [vmem:[%s31 + $0x10] sm:$0xff] %vm21, 0.0
    %35 = vst.msk [vmem:[%s31 + $0x18] sm:$0xff] %vm21, 0.0
  $region17: #{tpu_custom_call.1} parent=0 // pred_fallthru
    _
  %v36 = vld [vmem:[%s0] sm:$0xf]
  %v37 = vld [vmem:[%s0 + $0x4] sm:$0xf]
  %v38 = vld [vmem:[%s0 + $0x8] sm:$0xf]
  %v39 = vld [vmem:[%s0 + $0xc] sm:$0xf]
  %v40 = vld [vmem:[%s1] sm:$0xf]
  %v41 = vld [vmem:[%s1 + $0x4] sm:$0xf]
  %v42 = vld [vmem:[%s1 + $0x8] sm:$0xf]
  %v43 = vld [vmem:[%s1 + $0xc] sm:$0xf]
  %v48 = vunpack.c.l.b16 %v36
  %v49 = vunpack.c.l.b16 %v37
  %v50 = vunpack.c.l.b16 %v38
  %v51 = vunpack.c.l.b16 %v39
  %v52 = vpack.c.b16 %v49, %v48
  %v53 = vpack.c.b16 %v51, %v50
  %v58 = vunpack.c.l.b16 %v40
  %v59 = vunpack.c.l.b16 %v41
  %v60 = vunpack.c.l.b16 %v42
  %v61 = vunpack.c.l.b16 %v43
  %v62 = vpack.c.b16 %v59, %v58
  %v63 = vpack.c.b16 %v61, %v60
  %vm66 = vcmask 261120
  %v68 = vsel %vm66, %v52, 0
  %v71 = vsel %vm66, %v53, 0
  %73 = vmatpush.bf16.msra.mxu0 0
  %74 = vmatpush.bf16.msra.mxu0 0
  %75 = vmatpush.bf16.msra.mxu0 0
  %76 = vmatpush.bf16.msra.mxu0 0
  %77 = vmatpush.bf16.msra.mxu0 0
  %78 = vmatpush.bf16.msra.mxu0 0
  %79 = vmatpush.bf16.msra.mxu0 %v63
  %80 = vmatpush.bf16.msra.mxu0 %v62
  %81 = vmatmul.bf16.gmra.mxu0 %v68
  %v82 = vpop.f32.mrf.mxu0
  %v83 = vadd.f32 0.0, %v82
  %v84 = vpop.f32.mrf.mxu0
  %v85 = vadd.f32 0.0, %v84
  %86 = vmatmul.bf16.gmra.mxu0 %v71
  %v87 = vpop.f32.mrf.mxu0
  %v88 = vadd.f32 0.0, %v87
  %v89 = vpop.f32.mrf.mxu0
  %v90 = vadd.f32 0.0, %v89
  %91 = vdwg.mxu0
  %s92 = smul.u32 0, 128
  %v93 = vlaneseq
  %v94 = vand.u32 %v93, 127
  %v95 = vstv %s92
  %v96 = vadd.s32 %v95, %v94
  %s97 = smul.u32 0, 32
  %s98 = scalar_lea.vmem [#allocation2], %s97
  %v99 = vld [vmem:[%s98] sm:$0xff]
  %v100 = vld [vmem:[%s98 + $0x8] sm:$0xff]
  %v101 = vld [vmem:[%s98 + $0x10] sm:$0xff]
  %v102 = vld [vmem:[%s98 + $0x18] sm:$0xff]
  %103 = vmax.xlane.f32.xlu0 %v83
  %v104 = vpop.xlane.xlu0 %103
  %105 = vmax.xlane.f32.xlu0 %v85
  %v106 = vpop.xlane.xlu0 %105
  %107 = vmax.xlane.f32.xlu0 %v88
  %v108 = vpop.xlane.xlu0 %107
  %109 = vmax.xlane.f32.xlu0 %v90
  %v110 = vpop.xlane.xlu0 %109
  %v111 = vmax.f32 %v99, %v104
  %v112 = vmax.f32 %v100, %v106
  %v113 = vmax.f32 %v101, %v108
  %v114 = vmax.f32 %v102, %v110
  %v115 = vsub.f32 %v99, %v111
  %v116 = vsub.f32 %v100, %v112
  %v117 = vsub.f32 %v101, %v113
  %v118 = vsub.f32 %v102, %v114
  %v119 = vmul.f32 %v115, 1.442695
  %v120 = vpow.pop %v119
  %v121 = vmul.f32 %v116, 1.442695
  %v122 = vpow.pop %v121
  %v123 = vmul.f32 %v117, 1.442695
  %v124 = vpow.pop %v123
  %v125 = vmul.f32 %v118, 1.442695
  %v126 = vpow.pop %v125
  %128 = vset.pattern.permute.xlu0 0
  %129 = vperm.xlu0 %128, %v111
  %v130 = vpop.permute.xlu0 %129
  %133 = vset.pattern.permute.xlu0 0
  %134 = vperm.xlu0 %133, %v112
  %v135 = vpop.permute.xlu0 %134
  %138 = vset.pattern.permute.xlu0 0
  %139 = vperm.xlu0 %138, %v113
  %v140 = vpop.permute.xlu0 %139
  %143 = vset.pattern.permute.xlu0 0
  %144 = vperm.xlu0 %143, %v114
  %v145 = vpop.permute.xlu0 %144
  %v147 = vsub.f32 %v83, %v130
  %v148 = vsub.f32 %v85, %v135
  %v149 = vsub.f32 %v88, %v140
  %v150 = vsub.f32 %v90, %v145
  %v151 = vmul.f32 %v147, 1.442695
  %v152 = vpow.pop %v151
  %v153 = vmul.f32 %v148, 1.442695
  %v154 = vpow.pop %v153
  %v155 = vmul.f32 %v149, 1.442695
  %v156 = vpow.pop %v155
  %v157 = vmul.f32 %v150, 1.442695
  %v158 = vpow.pop %v157
  %159 = vadd.xlane.f32.xlu0 %v152
  %v160 = vpop.xlane.xlu0 %159
  %161 = vadd.xlane.f32.xlu0 %v154
  %v162 = vpop.xlane.xlu0 %161
  %163 = vadd.xlane.f32.xlu0 %v156
  %v164 = vpop.xlane.xlu0 %163
  %165 = vadd.xlane.f32.xlu0 %v158
  %v166 = vpop.xlane.xlu0 %165
  %s167 = scalar_lea.vmem [#allocation3], %s97
  %v168 = vld [vmem:[%s167] sm:$0xff]
  %v169 = vld [vmem:[%s167 + $0x8] sm:$0xff]
  %v170 = vld [vmem:[%s167 + $0x10] sm:$0xff]
  %v171 = vld [vmem:[%s167 + $0x18] sm:$0xff]
  %v172 = vmul.f32 %v120, %v168
  %v173 = vmul.f32 %v122, %v169
  %v174 = vmul.f32 %v124, %v170
  %v175 = vmul.f32 %v126, %v171
  %v176 = vadd.f32 %v172, %v160
  %v177 = vadd.f32 %v173, %v162
  %v178 = vadd.f32 %v174, %v164
  %v179 = vadd.f32 %v175, %v166
  %vm180 = vcmask 7168
  %181 = vst.msk [vmem:[%s167] sm:$0xff] %vm180, %v176
  %182 = vst.msk [vmem:[%s167 + $0x8] sm:$0xff] %vm180, %v177
  %183 = vst.msk [vmem:[%s167 + $0x10] sm:$0xff] %vm180, %v178
  %184 = vst.msk [vmem:[%s167 + $0x18] sm:$0xff] %vm180, %v179
  %185 = vst.msk [vmem:[%s98] sm:$0xff] %vm180, %v111
  %186 = vst.msk [vmem:[%s98 + $0x8] sm:$0xff] %vm180, %v112
  %187 = vst.msk [vmem:[%s98 + $0x10] sm:$0xff] %vm180, %v113
  %188 = vst.msk [vmem:[%s98 + $0x18] sm:$0xff] %vm180, %v114
  %v189 = vld [vmem:[%s2] sm:$0xff]
  %v190 = vld [vmem:[%s2 + $0x8] sm:$0xff]
  %v191 = vld [vmem:[%s2 + $0x10] sm:$0xff]
  %v192 = vld [vmem:[%s2 + $0x18] sm:$0xff]
  %193 = vset.pattern.permute.xlu0 0
  %194 = vperm.xlu0 %193, %v189
  %v195 = vpop.permute.xlu0 %194
  %196 = vset.pattern.permute.xlu0 0
  %197 = vperm.xlu0 %196, %v190
  %v198 = vpop.permute.xlu0 %197
  %199 = vset.pattern.permute.xlu0 0
  %200 = vperm.xlu0 %199, %v191
  %v201 = vpop.permute.xlu0 %200
  %202 = vset.pattern.permute.xlu0 0
  %203 = vperm.xlu0 %202, %v192
  %v204 = vpop.permute.xlu0 %203
  %vm205 = vcmp.eq.s32.totalorder %v96, %v195
  %vm206 = vcmp.eq.s32.totalorder %v96, %v198
  %vm207 = vcmp.eq.s32.totalorder %v96, %v201
  %vm208 = vcmp.eq.s32.totalorder %v96, %v204
  %s209 = scalar_lea.vmem [#allocation4], %s97
  %v210 = vld [vmem:[%s209] sm:$0xff]
  %v211 = vld [vmem:[%s209 + $0x8] sm:$0xff]
  %v212 = vld [vmem:[%s209 + $0x10] sm:$0xff]
  %v213 = vld [vmem:[%s209 + $0x18] sm:$0xff]
  %v214 = vsel %vm205, %v83, 0.0
  %v215 = vsel %vm206, %v85, 0.0
  %v216 = vsel %vm207, %v88, 0.0
  %v217 = vsel %vm208, %v90, 0.0
  %218 = vadd.xlane.f32.xlu0 %v214
  %v219 = vpop.xlane.xlu0 %218
  %220 = vadd.xlane.f32.xlu0 %v215
  %v221 = vpop.xlane.xlu0 %220
  %222 = vadd.xlane.f32.xlu0 %v216
  %v223 = vpop.xlane.xlu0 %222
  %224 = vadd.xlane.f32.xlu0 %v217
  %v225 = vpop.xlane.xlu0 %224
  %v226 = vadd.f32 %v210, %v219
  %v227 = vadd.f32 %v211, %v221
  %v228 = vadd.f32 %v212, %v223
  %v229 = vadd.f32 %v213, %v225
  %230 = vst.msk [vmem:[%s209] sm:$0xff] %vm180, %v226
  %231 = vst.msk [vmem:[%s209 + $0x8] sm:$0xff] %vm180, %v227
  %232 = vst.msk [vmem:[%s209 + $0x10] sm:$0xff] %vm180, %v228
  %233 = vst.msk [vmem:[%s209 + $0x18] sm:$0xff] %vm180, %v229
  // Predicated region
  $region18: #{tpu_custom_call.1} parent=0 // pred_check
    %p234 = pneg %p15
  $region19: #{tpu_custom_call.1} parent=0 // pred_check_branch
    %236 = sbr.rel (%p234) target = $region21
  $region20: #{tpu_custom_call.1} parent=0 // pred_region
    %v237 = vld [vmem:[%s209] sm:$0xff]
    %v238 = vld [vmem:[%s209 + $0x8] sm:$0xff]
    %v239 = vld [vmem:[%s209 + $0x10] sm:$0xff]
    %v240 = vld [vmem:[%s209 + $0x18] sm:$0xff]
    %v241 = vld [vmem:[%s98] sm:$0xff]
    %v242 = vld [vmem:[%s98 + $0x8] sm:$0xff]
    %v243 = vld [vmem:[%s98 + $0x10] sm:$0xff]
    %v244 = vld [vmem:[%s98 + $0x18] sm:$0xff]
    %v245 = vld [vmem:[%s167] sm:$0xff]
    %v246 = vld [vmem:[%s167 + $0x8] sm:$0xff]
    %v247 = vld [vmem:[%s167 + $0x10] sm:$0xff]
    %v248 = vld [vmem:[%s167 + $0x18] sm:$0xff]
    %v249 = vlog2.pop %v245
    %v250 = vmul.f32 %v249, 0.6931472
    %v251 = vlog2.pop %v246
    %v252 = vmul.f32 %v251, 0.6931472
    %v253 = vlog2.pop %v247
    %v254 = vmul.f32 %v253, 0.6931472
    %v255 = vlog2.pop %v248
    %v256 = vmul.f32 %v255, 0.6931472
    %v257 = vadd.f32 %v241, %v250
    %v258 = vadd.f32 %v242, %v252
    %v259 = vadd.f32 %v243, %v254
    %v260 = vadd.f32 %v244, %v256
    %v261 = vsub.f32 %v237, %v257
    %v262 = vsub.f32 %v238, %v258
    %v263 = vsub.f32 %v239, %v259
    %v264 = vsub.f32 %v240, %v260
    %265 = vst.msk [vmem:[%s3] sm:$0xff] %vm180, %v261
    %266 = vst.msk [vmem:[%s3 + $0x8] sm:$0xff] %vm180, %v262
    %267 = vst.msk [vmem:[%s3 + $0x10] sm:$0xff] %vm180, %v263
    %268 = vst.msk [vmem:[%s3 + $0x18] sm:$0xff] %vm180, %v264
  $region21: #{tpu_custom_call.1} parent=0 // pred_fallthru
    _
  // Predicated region
  $region22: #{tpu_custom_call.1} parent=0 // pred_check
    _
  $region23: #{tpu_custom_call.1} parent=0 // pred_check_branch
    %270 = sbr.rel (0) target = $region25
  $region24: #{tpu_custom_call.1} parent=0 // pred_region
    _
  $region25: #{tpu_custom_call.1} parent=0 // pred_fallthru
    _
  // Predicated region
  $region26: #{tpu_custom_call.1} parent=0 // pred_check
    _
  $region27: #{tpu_custom_call.1} parent=0 // pred_check_branch
    %272 = sbr.rel (0) target = $region29
  $region28: #{tpu_custom_call.1} parent=0 // pred_region
    _
  $region29: #{tpu_custom_call.1} parent=0 // pred_fallthru
    _

</llo_original>
